<compile_context>
chip_gen: v6e
topology: v6e:2x2x1
jax: 0.10.0
libtpu: 0.0.40
codegen_flags: <defaults>
</compile_context>

<pallas_src>
import functools

import jax
import jax.numpy as jnp
import numpy as np
from jax.experimental import pallas as pl
from jax.experimental.pallas import tpu as pltpu


def _hash_keep(row_idx_i32, seed_u32, thresh):
    """Stateless Bernoulli(keep_prob) bits: fmix32-style hash of (seed, row) vs threshold."""
    h = (row_idx_i32.astype(jnp.uint32) + jnp.uint32(1)) * jnp.uint32(0x9E3779B9)
    h = h ^ (seed_u32 * jnp.uint32(0x85EBCA6B))
    h = h ^ (h >> 16)
    h = h * jnp.uint32(0x85EBCA6B)
    h = h ^ (h >> 13)
    h = h * jnp.uint32(0xC2B2AE35)
    h = h ^ (h >> 16)
    return h < jnp.uint32(thresh)


def _proto_dropout_kernel(seed_ref, x_ref, y_ref, mask_ref, *, thresh, tile_rows):
    """seed_ref: SMEM (1,) i32; x_ref/y_ref: VMEM [TILE_L, E]; mask_ref: VMEM [1, TILE_L]."""
    i = pl.program_id(0)
    base = i * tile_rows
    seed_u = seed_ref[0].astype(jnp.uint32)

    # Lane-dense mask tile [1, TILE_L]: last dim on lanes -> unmasked stores,
    # contiguous writeback into the [1, L] mask output (no wrapper reshape).
    rows_lane = jax.lax.broadcasted_iota(jnp.int32, (1, tile_rows), 1) + base
    keep_lane = _hash_keep(rows_lane, seed_u, thresh)
    mask_ref[...] = keep_lane.astype(mask_ref.dtype)            # exact 0/1

    # Same bits, sublane-oriented [TILE_L, 1], for the row-broadcast select on x.
    rows_col = jax.lax.broadcasted_iota(jnp.int32, (tile_rows, 1), 0) + base
    keep_col = _hash_keep(rows_col, seed_u, thresh)
    x = x_ref[...]
    y_ref[...] = jnp.where(keep_col, x, jnp.zeros_like(x))


def _choose_tile_rows(L, E, itemsize):
    """Largest 128-multiple row tile whose double-buffered x+y fits ~16 MiB."""
    budget = 16 * 1024 * 1024
    per_row = 2 * 2 * E * itemsize + 2 * 8 * itemsize   # x+y double-buffered (+ tiny mask slab)
    tile = budget // max(per_row, 1)
    if tile >= L:
        return L                                        # whole array in one block
    return max(128, (tile // 128) * 128)


def proto_dropout(x, *, p=0.5, seed=0, tile_rows=None):
    """Pallas implementation of ProtoDropout.forward.

    Args:
      x: [L, E] float array ([type_length, embedding_size]).
      p: probability of zeroing an entire row (a "type").
      seed: int32 seed (determinism stand-in for torch's global RNG state).
      tile_rows: optional row-tile override (rounded to a multiple of 128, or L).

    Returns:
      (y, mask): y is [L, E] in x.dtype; mask is [1, L] in x.dtype with 0/1
      values and NO 1/(1-p) rescale (matches the PyTorch module).
    """
    L, E = x.shape
    itemsize = jnp.dtype(x.dtype).itemsize

    keep_prob = 1.0 - float(p)
    if keep_prob <= 0.0:
        thresh = 0                            # drop every row
    elif keep_prob >= 1.0:
        thresh = 0xFFFFFFFF                   # keep every row (bias 2**-32, negligible)
    else:
        thresh = int(keep_prob * 4294967296.0)

    if tile_rows is None:
        tile_rows = _choose_tile_rows(L, E, itemsize)
    tile_rows = int(tile_rows)
    if tile_rows >= L:
        tile_rows = L
    else:
        # Lane-dense mask blocks need TILE_L % 128 == 0 (or TILE_L == L).
        tile_rows = max(128, (tile_rows // 128) * 128)
        if tile_rows >= L:
            tile_rows = L
    grid = (pl.cdiv(L, tile_rows),)

    seed_arr = jnp.asarray([seed], dtype=jnp.int32)
    kernel = functools.partial(_proto_dropout_kernel, thresh=thresh, tile_rows=tile_rows)

    y, mask = pl.pallas_call(
        kernel,
        out_shape=(
            jax.ShapeDtypeStruct((L, E), x.dtype),
            jax.ShapeDtypeStruct((1, L), x.dtype),   # torch: mask dtype == x dtype
        ),
        grid=grid,
        in_specs=[
            pl.BlockSpec(memory_space=pltpu.MemorySpace.SMEM),       # seed scalar
            pl.BlockSpec((tile_rows, E), lambda i: (i, 0)),          # x row tile
        ],
        out_specs=(
            pl.BlockSpec((tile_rows, E), lambda i: (i, 0)),          # y row tile
            pl.BlockSpec((1, tile_rows), lambda i: (0, i)),          # mask lane tile
        ),
        compiler_params=pltpu.CompilerParams(
            dimension_semantics=("parallel",),       # shard row tiles across TCs (v7x)
            vmem_limit_bytes=32 * 1024 * 1024,       # headroom over the ~16 MiB budget
        ),
        cost_estimate=pl.CostEstimate(
            flops=L * E,                             # one select per element
            transcendentals=0,
            bytes_accessed=2 * L * E * itemsize + 2 * L * itemsize,
        ),
    )(seed_arr, x)

    return y, mask


if __name__ == "__main__":
    key = jax.random.PRNGKey(0)

    # Small shape matching the module's [type_length, embedding_size] layout.
    L, E = 8, 32
    x = jax.random.normal(key, (L, E), dtype=jnp.float32)

    y, mask = proto_dropout(x, p=0.5, seed=0)
    jax.block_until_ready((y, mask))

    assert y.shape == (L, E), y.shape
    assert mask.shape == (1, L), mask.shape

    x_np, y_np, m_np = np.asarray(x), np.asarray(y), np.asarray(mask)
    assert set(np.unique(m_np)).issubset({0.0, 1.0})
    np.testing.assert_allclose(y_np, x_np * m_np.T, rtol=1e-6, atol=1e-6)

    # Larger shape with an explicit tile size to exercise the multi-step grid
    # and the lane-dense mask tiling (tile_rows is a multiple of 128).
    L2, E2 = 1024, 128
    x2 = jax.random.normal(jax.random.PRNGKey(1), (L2, E2), dtype=jnp.float32)
    y2, mask2 = proto_dropout(x2, p=0.3, seed=7, tile_rows=256)
    jax.block_until_ready((y2, mask2))
    m2_np = np.asarray(mask2)
    assert mask2.shape == (1, L2), mask2.shape
    assert set(np.unique(m2_np)).issubset({0.0, 1.0})
    np.testing.assert_allclose(np.asarray(y2), np.asarray(x2) * m2_np.T,
                               rtol=1e-6, atol=1e-6)

    # Sanity: keep-fraction roughly matches 1 - p.
    frac = float(m2_np.mean())
    assert 0.55 < frac < 0.85, frac

    print("KERNEL_OK")
</pallas_src>

<mosaic_0001>
module attributes {stable_mosaic.version = 11 : i64} {
  func.func @_proto_dropout_kernel(%arg0: i32, %arg1: memref<1xi32, #tpu.memory_space<smem>>, %arg2: memref<8x32xf32, #tpu.memory_space<vmem>>, %arg3: memref<8x32xf32, #tpu.memory_space<vmem>>, %arg4: memref<1x8xf32, #tpu.memory_space<vmem>>) attributes {dimension_semantics = [#tpu.dimension_semantics<parallel>], iteration_bounds = array<i64: 1>, scalar_prefetch = 0 : i64, scratch_operands = 0 : i64, tpu.core_type = #tpu.core_type<tc>, window_params = [{transform_indices = @transform_0, window_bounds = array<i64: 1>}, {transform_indices = @transform_1, window_bounds = array<i64: 8, 32>}, {transform_indices = @transform_2, window_bounds = array<i64: 8, 32>}, {transform_indices = @transform_3, window_bounds = array<i64: 1, 8>}]} {
    %c8_i32 = arith.constant 8 : i32
    %0 = arith.muli %arg0, %c8_i32 : i32
    %c0 = arith.constant 0 : index
    %1 = memref.load %arg1[%c0] : memref<1xi32, #tpu.memory_space<smem>>
    %2 = tpu.iota {dimensions = array<i32: 1>} : vector<1x8xi32>
    %3 = vector.broadcast %0 : i32 to vector<1x8xi32>
    %4 = arith.addi %2, %3 : vector<1x8xi32>
    %c1_i32 = arith.constant 1 : i32
    %5 = vector.broadcast %c1_i32 : i32 to vector<1x8xi32>
    %6 = arith.addi %4, %5 : vector<1x8xi32>
    %c-1640531527_i32 = arith.constant -1640531527 : i32
    %7 = vector.broadcast %c-1640531527_i32 : i32 to vector<1x8xi32>
    %8 = arith.muli %6, %7 : vector<1x8xi32>
    %c-2048144789_i32 = arith.constant -2048144789 : i32
    %9 = arith.muli %1, %c-2048144789_i32 : i32
    %10 = vector.broadcast %9 : i32 to vector<1x8xi32>
    %11 = arith.xori %8, %10 : vector<1x8xi32>
    %c16_i32 = arith.constant 16 : i32
    %12 = vector.broadcast %c16_i32 : i32 to vector<1x8xi32>
    %13 = arith.shrui %11, %12 : vector<1x8xi32>
    %14 = arith.xori %11, %13 : vector<1x8xi32>
    %c-2048144789_i32_0 = arith.constant -2048144789 : i32
    %15 = vector.broadcast %c-2048144789_i32_0 : i32 to vector<1x8xi32>
    %16 = arith.muli %14, %15 : vector<1x8xi32>
    %c13_i32 = arith.constant 13 : i32
    %17 = vector.broadcast %c13_i32 : i32 to vector<1x8xi32>
    %18 = arith.shrui %16, %17 : vector<1x8xi32>
    %19 = arith.xori %16, %18 : vector<1x8xi32>
    %c-1028477387_i32 = arith.constant -1028477387 : i32
    %20 = vector.broadcast %c-1028477387_i32 : i32 to vector<1x8xi32>
    %21 = arith.muli %19, %20 : vector<1x8xi32>
    %c16_i32_1 = arith.constant 16 : i32
    %22 = vector.broadcast %c16_i32_1 : i32 to vector<1x8xi32>
    %23 = arith.shrui %21, %22 : vector<1x8xi32>
    %24 = arith.xori %21, %23 : vector<1x8xi32>
    %c-2147483648_i32 = arith.constant -2147483648 : i32
    %25 = vector.broadcast %c-2147483648_i32 : i32 to vector<1x8xi32>
    %26 = arith.cmpi ult, %24, %25 : vector<1x8xi32>
    %27 = arith.extui %26 : vector<1x8xi1> to vector<1x8xi32>
    %28 = arith.sitofp %27 : vector<1x8xi32> to vector<1x8xf32>
    %c0_2 = arith.constant 0 : index
    %c0_3 = arith.constant 0 : index
    %29 = vector.load %arg4[%c0_2, %c0_3] : memref<1x8xf32, #tpu.memory_space<vmem>>, vector<1x8xf32>
    tpu.vector_store %arg4[%c0_2, %c0_3], %28 {strides = array<i32>} : memref<1x8xf32, #tpu.memory_space<vmem>>, vector<1x8xf32>,
    %30 = tpu.iota {dimensions = array<i32: 0>} : vector<8x1xi32>
    %31 = vector.broadcast %0 : i32 to vector<8x1xi32>
    %32 = arith.addi %30, %31 : vector<8x1xi32>
    %c1_i32_4 = arith.constant 1 : i32
    %33 = vector.broadcast %c1_i32_4 : i32 to vector<8x1xi32>
    %34 = arith.addi %32, %33 : vector<8x1xi32>
    %c-1640531527_i32_5 = arith.constant -1640531527 : i32
    %35 = vector.broadcast %c-1640531527_i32_5 : i32 to vector<8x1xi32>
    %36 = arith.muli %34, %35 : vector<8x1xi32>
    %c-2048144789_i32_6 = arith.constant -2048144789 : i32
    %37 = arith.muli %1, %c-2048144789_i32_6 : i32
    %38 = vector.broadcast %37 : i32 to vector<8x1xi32>
    %39 = arith.xori %36, %38 : vector<8x1xi32>
    %c16_i32_7 = arith.constant 16 : i32
    %40 = vector.broadcast %c16_i32_7 : i32 to vector<8x1xi32>
    %41 = arith.shrui %39, %40 : vector<8x1xi32>
    %42 = arith.xori %39, %41 : vector<8x1xi32>
    %c-2048144789_i32_8 = arith.constant -2048144789 : i32
    %43 = vector.broadcast %c-2048144789_i32_8 : i32 to vector<8x1xi32>
    %44 = arith.muli %42, %43 : vector<8x1xi32>
    %c13_i32_9 = arith.constant 13 : i32
    %45 = vector.broadcast %c13_i32_9 : i32 to vector<8x1xi32>
    %46 = arith.shrui %44, %45 : vector<8x1xi32>
    %47 = arith.xori %44, %46 : vector<8x1xi32>
    %c-1028477387_i32_10 = arith.constant -1028477387 : i32
    %48 = vector.broadcast %c-1028477387_i32_10 : i32 to vector<8x1xi32>
    %49 = arith.muli %47, %48 : vector<8x1xi32>
    %c16_i32_11 = arith.constant 16 : i32
    %50 = vector.broadcast %c16_i32_11 : i32 to vector<8x1xi32>
    %51 = arith.shrui %49, %50 : vector<8x1xi32>
    %52 = arith.xori %49, %51 : vector<8x1xi32>
    %c-2147483648_i32_12 = arith.constant -2147483648 : i32
    %53 = vector.broadcast %c-2147483648_i32_12 : i32 to vector<8x1xi32>
    %54 = arith.cmpi ult, %52, %53 : vector<8x1xi32>
    %c0_13 = arith.constant 0 : index
    %c0_14 = arith.constant 0 : index
    %55 = vector.load %arg2[%c0_13, %c0_14] : memref<8x32xf32, #tpu.memory_space<vmem>>, vector<8x32xf32>
    %cst = arith.constant 0.000000e+00 : f32
    %56 = vector.broadcast %cst : f32 to vector<8x32xf32>
    %57 = vector.shape_cast %54 : vector<8x1xi1> to vector<8x1xi1>
    %58 = vector.broadcast %57 : vector<8x1xi1> to vector<8x32xi1>
    %59 = arith.select %58, %55, %56 : vector<8x32xi1>, vector<8x32xf32>
    %c0_15 = arith.constant 0 : index
    %c0_16 = arith.constant 0 : index
    %60 = vector.load %arg3[%c0_15, %c0_16] : memref<8x32xf32, #tpu.memory_space<vmem>>, vector<8x32xf32>
    tpu.vector_store %arg3[%c0_15, %c0_16], %59 {strides = array<i32>} : memref<8x32xf32, #tpu.memory_space<vmem>>, vector<8x32xf32>,
    return
  }
  func.func @transform_0(%arg0: i32) -> i32 {
    %c0_i32 = arith.constant 0 : i32
    %c0_i32_0 = arith.constant 0 : i32
    return %c0_i32 : i32
  }
  func.func @transform_1(%arg0: i32) -> (i32, i32) {
    %c0_i32 = arith.constant 0 : i32
    %c0_i32_0 = arith.constant 0 : i32
    return %arg0, %c0_i32 : i32, i32
  }
  func.func @transform_2(%arg0: i32) -> (i32, i32) {
    %c0_i32 = arith.constant 0 : i32
    %c0_i32_0 = arith.constant 0 : i32
    return %arg0, %c0_i32 : i32, i32
  }
  func.func @transform_3(%arg0: i32) -> (i32, i32) {
    %c0_i32 = arith.constant 0 : i32
    %c0_i32_0 = arith.constant 0 : i32
    return %c0_i32, %arg0 : i32, i32
  }
}

</mosaic_0001>

<llo_original>
// kernel: tpu_custom_call.1
$region0: #{tpu_custom_call.1}
  #allocation0 [shape = 'u32[]', space=smem, size = 0x4, offset = 0x4, fixed_abs, tag = 'smem constant byte address 0x4 - core index']
  #allocation1 [shape = 'u32[144,128]{1,0:T(1,128)}', space=vmem, size = 0x12000, scoped, tag = 'internal scratch']
  #allocation2 [shape = 's32[1]{0:T(128)S(6)}', space=smem, size = 0x200, scoped, tag = 'scoped memory for tpu_custom_call.1']
  %s0 = inlined_call_operand.<no memory space> [shape: s32[1], index: 0, kind: input, shape index: {}]
  %s1 = inlined_call_operand.hbm [shape: f32[8,32], index: 1, kind: input, shape index: {}]
  %s2 = inlined_call_operand.hbm [shape: f32[8,32], index: 2, kind: output, shape index: {0}]
  %s3 = inlined_call_operand.hbm [shape: f32[1,8], index: 3, kind: output, shape index: {1}]
  %4 = xla_tuple %s2, %s3
  %s5 = sld [smem:[#allocation0]]
  $region30: #{tpu_custom_call.1} parent=0
    _
  %s7 = ssub.s32 1, %s5
  %s8 = scalar_select 0, %s7, %s5
  %9 = sst [smem:[#allocation2]] %s0
  $region1: #{tpu_custom_call.1} parent=0
    #allocation3 [shape = 'u8[4096]{0}', space=vmem, size = 0x1000, scoped, tag = 'input window, operand 1, single buffered']
    #allocation4 [shape = 's32[1]{0}', space=sflag, size = 0x4, scoped, tag = 'scoped memory for tpu_custom_call.1']
    #allocation5 [shape = 's32[1]{0}', space=sflag, size = 0x4, scoped, tag = 'scoped memory for tpu_custom_call.1']
    #allocation6 [shape = 'u8[4096]{0}', space=vmem, size = 0x1000, scoped, tag = 'output window, operand 0, single buffered']
    #allocation7 [shape = 'u8[512]{0}', space=vmem, size = 0x400, scoped, tag = 'output window, operand 1, single buffered']
    #allocation8 [shape = 's32[1]{0}', space=sflag, size = 0x4, scoped, tag = 'scoped memory for tpu_custom_call.1']
    %10 = vsyncpa [#allocation4], 0
    %11 = vsyncpa [#allocation5], 0
    %12 = vsyncpa [#allocation8], 0
    // Predicated region
    $region2: #{tpu_custom_call.1} parent=1 // pred_check
      _
    $region3: #{tpu_custom_call.1} parent=1 // pred_check_branch
      %14 = sbr.rel (0) target = $region5
    $region4: #{tpu_custom_call.1} parent=1 // pred_region
      _
    $region5: #{tpu_custom_call.1} parent=1 // pred_fallthru
      _
    // Predicated region
    $region6: #{tpu_custom_call.1} parent=1 // pred_check
      _
    $region7: #{tpu_custom_call.1} parent=1 // pred_check_branch
      %16 = sbr.rel (0) target = $region9
    $region8: #{tpu_custom_call.1} parent=1 // pred_region
      %s18 = ssub.s32 128, 128
      %19 = vsyncadd [#allocation4], %s18
      %s21 = sshll.u32 [#allocation3], 4
      %s22 = int_to_ptr.vmem [resolvable:$true] %s21
      %24 = dma.hbm_to_vmem [thread:$0]  %s1, 128, %s22, [#allocation4]
    $region9: #{tpu_custom_call.1} parent=1 // pred_fallthru
      _
    // Predicated region
    $region10: #{tpu_custom_call.1} parent=1 // pred_check
      _
    $region11: #{tpu_custom_call.1} parent=1 // pred_check_branch
      %26 = sbr.rel (0) target = $region13
    $region12: #{tpu_custom_call.1} parent=1 // pred_region
      %27 = dma.done [#allocation4], 128
    $region13: #{tpu_custom_call.1} parent=1 // pred_fallthru
      _
    %s28 = smul.u32 0, 8
    %s29 = sld [smem:[#allocation2]]
    %v30 = vlaneseq
    %v31 = vand.u32 %v30, 127
    %v32 = vstv %s28
    %v33 = vadd.s32 %v31, %v32
    %v34 = vadd.s32 %v33, 1
    %v35 = vmul.u32 %v34, 2654435769
    %s36 = smul.u32 %s29, 2246822507
    %v37 = vstv %s36
    %v38 = vxor.u32 %v35, %v37
    %v39 = vshrl.u32 %v38, 16
    %v40 = vxor.u32 %v38, %v39
    %v41 = vmul.u32 %v40, 2246822507
    %v42 = vshrl.u32 %v41, 13
    %v43 = vxor.u32 %v41, %v42
    %v44 = vmul.u32 %v43, 3266489909
    %v45 = vshrl.u32 %v44, 16
    %v46 = vxor.u32 %v44, %v45
    %vm47 = vcmp.lt.u32.totalorder %v46, 2147483648
    %v48 = vsel %vm47, 1, 0
    %v49 = vcvt.s32.f32 %v48
    %vm50 = vcmask 57344
    %51 = vst.msk [vmem:[#allocation7] sm:$0x1] %vm50, %v49
    %v52 = vlaneseq
    %v53 = vshrl.u32 %v52, 7
    %v54 = vadd.s32 %v53, %v32
    %v55 = vadd.s32 %v54, 1
    %v56 = vmul.u32 %v55, 2654435769
    %v57 = vxor.u32 %v56, %v37
    %v58 = vshrl.u32 %v57, 16
    %v59 = vxor.u32 %v57, %v58
    %v60 = vmul.u32 %v59, 2246822507
    %v61 = vshrl.u32 %v60, 13
    %v62 = vxor.u32 %v60, %v61
    %v63 = vmul.u32 %v62, 3266489909
    %v64 = vshrl.u32 %v63, 16
    %v65 = vxor.u32 %v63, %v64
    %vm66 = vcmp.lt.u32.totalorder %v65, 2147483648
    %v67 = vld [vmem:[#allocation3] sm:$0xff]
    %v68 = vsel %vm66, 1, 0
    %vm69 = vcmp.eq.s32.totalorder %v68, 1
    %v70 = vsel %vm69, %v67, 0.0
    %vm71 = vcmask 261120
    %72 = vst.msk [vmem:[#allocation6] sm:$0xff] %vm71, %v70
    // Predicated region
    $region14: #{tpu_custom_call.1} parent=1 // pred_check
      _
    $region15: #{tpu_custom_call.1} parent=1 // pred_check_branch
      %74 = sbr.rel (0) target = $region17
    $region16: #{tpu_custom_call.1} parent=1 // pred_region
      %s76 = ssub.s32 128, 128
      %77 = vsyncadd [#allocation5], %s76
      %s79 = sshll.u32 [#allocation6], 4
      %s80 = int_to_ptr.vmem [resolvable:$true] %s79
      %82 = dma.vmem_to_hbm [thread:$0]  %s80, 128, %s2, [#allocation5]
    $region17: #{tpu_custom_call.1} parent=1 // pred_fallthru
      _
    // Predicated region
    $region18: #{tpu_custom_call.1} parent=1 // pred_check
      _
    $region19: #{tpu_custom_call.1} parent=1 // pred_check_branch
      %84 = sbr.rel (0) target = $region21
    $region20: #{tpu_custom_call.1} parent=1 // pred_region
      %s86 = ssub.s32 16, 16
      %87 = vsyncadd [#allocation8], %s86
      %s89 = sshll.u32 [#allocation7], 4
      %s90 = int_to_ptr.vmem [resolvable:$true] %s89
      %92 = dma.vmem_to_hbm [thread:$0]  %s90, 16, %s3, [#allocation8]
    $region21: #{tpu_custom_call.1} parent=1 // pred_fallthru
      _
    // Predicated region
    $region22: #{tpu_custom_call.1} parent=1 // pred_check
      _
    $region23: #{tpu_custom_call.1} parent=1 // pred_check_branch
      %94 = sbr.rel (0) target = $region25
    $region24: #{tpu_custom_call.1} parent=1 // pred_region
      %95 = dma.done [#allocation5], 128
    $region25: #{tpu_custom_call.1} parent=1 // pred_fallthru
      _
    // Predicated region
    $region26: #{tpu_custom_call.1} parent=1 // pred_check
      _
    $region27: #{tpu_custom_call.1} parent=1 // pred_check_branch
      %97 = sbr.rel (0) target = $region29
    $region28: #{tpu_custom_call.1} parent=1 // pred_region
      %98 = dma.done [#allocation8], 16
    $region29: #{tpu_custom_call.1} parent=1 // pred_fallthru
      _
    %99 = vsyncpa [#allocation4], 1
    %100 = vsyncpa [#allocation5], 1
    %101 = vsyncpa [#allocation8], 1

</llo_original>
